<compile_context>
chip_gen: v6e
topology: v6e:2x2x1
jax: 0.10.0
libtpu: 0.0.40
codegen_flags: <defaults>
</compile_context>

<pallas_src>
import jax
import jax.numpy as jnp
from jax.experimental import pallas as pl
from jax.experimental.pallas import tpu as pltpu

_EPS = 1e-12            # matches torch F.normalize default eps
_MAX_TILE_S = 4096      # lanes per step (keeps per-step bytes large enough on v7x)


def _round_up(x, m):
    return (x + m - 1) // m * m


def _sublane_quantum(itemsize):
    # f32 -> 8, bf16/f16 -> 16, int8/fp8 -> 32 sublane packing quantum.
    return max(8, 32 // itemsize)


def _chip_profile():
    """(vmem_budget_bytes, vmem_cap_bytes, multi_tensorcore) best-effort."""
    kind = ""
    try:
        kind = str(jax.devices()[0].device_kind).lower()
    except Exception:
        pass
    if "v7" in kind or "7x" in kind:
        # v7x: 64 MiB VMEM per TensorCore, 2 TensorCores per chip.
        return 24 << 20, 48 << 20, True
    if any(tag in kind for tag in ("v6", "v5", "v4", "v3", "v2")):
        multi = ("v4" in kind) or ("v5p" in kind)   # megacore parts
        return 48 << 20, 96 << 20, multi            # 128 MiB VMEM parts
    # Unknown chip: conservative (v7x-safe) profile.
    return 24 << 20, 48 << 20, False


# ---------------------------------------------------------------------------
# Main (single-pass) kernel: whole C fits in the block.
# ---------------------------------------------------------------------------
def _l2norm_kernel(x_ref, o_ref):
    # Sum of squares over channels (sublane axis).  The f32 upcast is only
    # needed for the reduction; x is re-read from VMEM for the multiply so the
    # upcast temp is not live across the reduction.
    xf = x_ref[...].astype(jnp.float32)
    ssq = jnp.sum(xf * xf, axis=1, keepdims=True)            # (tn, 1, ts)
    # max(sqrt(ssq), eps) == sqrt(max(ssq, eps^2))  ->  single EUP rsqrt.
    scale = jax.lax.rsqrt(jnp.maximum(ssq, _EPS * _EPS))
    o_ref[...] = (x_ref[...].astype(jnp.float32) * scale).astype(o_ref.dtype)


# ---------------------------------------------------------------------------
# Large-C fallback kernels: channel reduction split over a grid axis.
# ---------------------------------------------------------------------------
def _make_ssq_scale_kernel(tile_c, C):
    ragged_c = (C % tile_c) != 0

    def kernel(x_ref, scale_ref):
        c = pl.program_id(2)

        @pl.when(c == 0)
        def _init():
            scale_ref[...] = jnp.zeros_like(scale_ref)

        x = x_ref[...].astype(jnp.float32)
        if ragged_c:
            # Mask out-of-range channel rows of the ragged last C tile so
            # garbage sublanes can't contaminate the reduction.
            cid = jax.lax.broadcasted_iota(jnp.int32, x.shape, 1) + c * tile_c
            x = jnp.where(cid < C, x, 0.0)
        scale_ref[...] += jnp.sum(x * x, axis=1, keepdims=True)

        @pl.when(c == pl.num_programs(2) - 1)
        def _finalize():
            scale_ref[...] = jax.lax.rsqrt(jnp.maximum(scale_ref[...], _EPS * _EPS))

    return kernel


def _scale_apply_kernel(x_ref, scale_ref, o_ref):
    o_ref[...] = (x_ref[...].astype(jnp.float32) * scale_ref[...]).astype(o_ref.dtype)


# ---------------------------------------------------------------------------
# Tiling helpers
# ---------------------------------------------------------------------------
def _choose_tile_s(S, itemsize, c_eff, budget):
    """Lane tile (multiple of 128, or full S when S < 128) and whether the
    whole-C block fits the per-step budget."""
    if S < 128:
        tile_s = S                                    # full extent (always legal)
    else:
        tile_s = min(_MAX_TILE_S, 128 * (S // 128))   # lane-dense, never > S

    def fits(ts):
        # 2 (double buffering) x 2 (input + output) blocks per step.
        return 4 * c_eff * _round_up(ts, 128) * itemsize <= budget

    while tile_s > 128 and not fits(tile_s):
        tile_s -= 128
    return tile_s, fits(tile_s)


def _l2norm_single_pass(xr, tile_s, c_eff, itemsize, budget, cap, multi_core):
    N, C, S = xr.shape
    ts_eff = _round_up(tile_s, 128)
    per_n = 4 * c_eff * ts_eff * itemsize           # dbl-buffered in+out per batch row
    tile_n = int(max(1, min(N, budget // per_n)))
    grid_n = pl.cdiv(N, tile_n)
    grid_s = pl.cdiv(S, tile_s)

    # Multi-TensorCore chips: keep at least 2 grid steps so both cores get work.
    if multi_core and grid_n * grid_s < 2:
        if N >= 2:
            tile_n = (N + 1) // 2
            grid_n = pl.cdiv(N, tile_n)
        elif S > 128 and tile_s > 128:
            tile_s = max(128, (tile_s // 2 // 128) * 128)
            ts_eff = _round_up(tile_s, 128)
            grid_s = pl.cdiv(S, tile_s)

    step_bytes = 4 * tile_n * c_eff * ts_eff * itemsize
    vmem_limit = int(min(cap, max(32 << 20, 2 * step_bytes)))

    return pl.pallas_call(
        _l2norm_kernel,
        out_shape=jax.ShapeDtypeStruct((N, C, S), xr.dtype),
        grid_spec=pltpu.PrefetchScalarGridSpec(
            num_scalar_prefetch=0,
            grid=(grid_n, grid_s),
            in_specs=[pl.BlockSpec((tile_n, C, tile_s), lambda n, s: (n, 0, s))],
            out_specs=pl.BlockSpec((tile_n, C, tile_s), lambda n, s: (n, 0, s)),
        ),
        compiler_params=pltpu.CompilerParams(
            dimension_semantics=("parallel", "parallel"),
            vmem_limit_bytes=vmem_limit,
        ),
    )(xr)


def _l2norm_c_split(xr, sub_q, itemsize, budget, cap):
    """Fallback for channel counts too large for a single block: two passes."""
    N, C, S = xr.shape
    if S < 128:
        tile_s = S
    else:
        tile_s = min(512, 128 * (S // 128))
    ts_eff = _round_up(tile_s, 128)

    per_c = 4 * ts_eff * itemsize                   # dbl-buffered in+out per channel row
    if C <= sub_q:
        tile_c = C                                  # full-extent channel block
    else:
        c_cap = (C // sub_q) * sub_q
        tile_c = (budget // per_c) // sub_q * sub_q
        tile_c = int(max(sub_q, min(tile_c, c_cap)))

    grid = (N, pl.cdiv(S, tile_s), pl.cdiv(C, tile_c))
    step_bytes = 4 * tile_c * ts_eff * itemsize
    vmem_limit = int(min(cap, max(32 << 20, 2 * step_bytes)))

    x_spec = pl.BlockSpec((1, tile_c, tile_s), lambda n, s, c: (n, c, s))
    scale_spec = pl.BlockSpec((1, 1, tile_s), lambda n, s, c: (n, 0, s))

    # Pass 1: accumulate sum(x^2) over the C grid axis, finalize to 1/max(||x||, eps).
    scale = pl.pallas_call(
        _make_ssq_scale_kernel(tile_c, C),
        out_shape=jax.ShapeDtypeStruct((N, 1, S), jnp.float32),
        grid_spec=pltpu.PrefetchScalarGridSpec(
            num_scalar_prefetch=0,
            grid=grid,
            in_specs=[x_spec],
            out_specs=scale_spec,
        ),
        compiler_params=pltpu.CompilerParams(
            dimension_semantics=("parallel", "parallel", "arbitrary"),
            vmem_limit_bytes=vmem_limit,
        ),
    )(xr)

    # Pass 2: re-stream x and apply the per-(n, spatial) scale.
    return pl.pallas_call(
        _scale_apply_kernel,
        out_shape=jax.ShapeDtypeStruct((N, C, S), xr.dtype),
        grid_spec=pltpu.PrefetchScalarGridSpec(
            num_scalar_prefetch=0,
            grid=grid,
            in_specs=[x_spec, scale_spec],
            out_specs=x_spec,
        ),
        compiler_params=pltpu.CompilerParams(
            dimension_semantics=("parallel", "parallel", "parallel"),
            vmem_limit_bytes=vmem_limit,
        ),
    )(xr, scale)


# ---------------------------------------------------------------------------
# Public wrapper (== torch.nn.functional.normalize(x, p=2, dim=1) on NCHW)
# ---------------------------------------------------------------------------
def l2_normalize(x, *, vmem_budget_bytes=None):
    N, C, H, W = x.shape
    S = H * W
    itemsize = jnp.dtype(x.dtype).itemsize
    budget, cap, multi_core = _chip_profile()
    if vmem_budget_bytes is not None:
        budget = int(vmem_budget_bytes)

    sub_q = _sublane_quantum(itemsize)
    c_eff = _round_up(C, sub_q)

    xr = x.reshape(N, C, S)
    tile_s, fits = _choose_tile_s(S, itemsize, c_eff, budget)

    if fits:
        out = _l2norm_single_pass(xr, tile_s, c_eff, itemsize, budget, cap, multi_core)
    else:
        out = _l2norm_c_split(xr, sub_q, itemsize, budget, cap)
    return out.reshape(N, C, H, W)


def _reference(x):
    xf = x.astype(jnp.float32)
    ssq = jnp.sum(xf * xf, axis=1, keepdims=True)
    denom = jnp.maximum(jnp.sqrt(ssq), _EPS)
    return (xf / denom).astype(x.dtype)


if __name__ == "__main__":
    root = jax.random.PRNGKey(0)
    k1, k2, k3 = jax.random.split(root, 3)

    # Main test shape (matches the module's conv-feature usage).
    x = jax.random.normal(k1, (2, 4, 16, 16), dtype=jnp.float32)
    y = l2_normalize(x)
    jax.block_until_ready(y)
    assert y.shape == x.shape
    assert jnp.allclose(y, _reference(x), atol=1e-6, rtol=1e-5), "mismatch vs reference"

    # Non-lane-divisible spatial size (14*14 = 196): exercises the ragged
    # (masked) last spatial tile with NO pre-pad / post-slice HBM passes.
    x2 = jax.random.normal(k2, (2, 4, 14, 14), dtype=jnp.float32)
    y2 = l2_normalize(x2)
    jax.block_until_ready(y2)
    assert jnp.allclose(y2, _reference(x2), atol=1e-6, rtol=1e-5), "mismatch (ragged S)"

    # Force the large-C fallback (channel-split reduction) with a tiny budget.
    x3 = jax.random.normal(k3, (2, 60, 16, 16), dtype=jnp.float32)
    y3 = l2_normalize(x3, vmem_budget_bytes=64 * 1024)
    jax.block_until_ready(y3)
    assert jnp.allclose(y3, _reference(x3), atol=1e-6, rtol=1e-5), "mismatch (C-split)"

    print("KERNEL_OK")
</pallas_src>

<mosaic_0001>
module attributes {stable_mosaic.version = 11 : i64} {
  func.func @_l2norm_kernel(%arg0: i32, %arg1: i32, %arg2: memref<2x4x256xf32, #tpu.memory_space<vmem>>, %arg3: memref<2x4x256xf32, #tpu.memory_space<vmem>>) attributes {dimension_semantics = [#tpu.dimension_semantics<parallel>, #tpu.dimension_semantics<parallel>], iteration_bounds = array<i64: 1, 1>, scalar_prefetch = 0 : i64, scratch_operands = 0 : i64, tpu.core_type = #tpu.core_type<tc>, window_params = [{transform_indices = @transform_0, window_bounds = array<i64: 2, 4, 256>}, {transform_indices = @transform_1, window_bounds = array<i64: 2, 4, 256>}]} {
    %c0 = arith.constant 0 : index
    %c0_0 = arith.constant 0 : index
    %c0_1 = arith.constant 0 : index
    %0 = vector.load %arg2[%c0, %c0_0, %c0_1] : memref<2x4x256xf32, #tpu.memory_space<vmem>>, vector<2x4x256xf32>
    %1 = arith.mulf %0, %0 : vector<2x4x256xf32>
    %cst = arith.constant dense<0.000000e+00> : vector<2x256xf32>
    %2 = vector.multi_reduction <add>, %1, %cst [1] : vector<2x4x256xf32> to vector<2x256xf32>
    %3 = vector.shape_cast %2 : vector<2x256xf32> to vector<2x1x256xf32>
    %cst_2 = arith.constant 1.000000e-24 : f32
    %4 = vector.broadcast %cst_2 : f32 to vector<2x1x256xf32>
    %5 = arith.maximumf %3, %4 : vector<2x1x256xf32>
    %6 = math.rsqrt %5 : vector<2x1x256xf32>
    %c0_3 = arith.constant 0 : index
    %c0_4 = arith.constant 0 : index
    %c0_5 = arith.constant 0 : index
    %7 = vector.load %arg2[%c0_3, %c0_4, %c0_5] : memref<2x4x256xf32, #tpu.memory_space<vmem>>, vector<2x4x256xf32>
    %8 = vector.broadcast %6 : vector<2x1x256xf32> to vector<2x4x256xf32>
    %9 = arith.mulf %7, %8 : vector<2x4x256xf32>
    %c0_6 = arith.constant 0 : index
    %c0_7 = arith.constant 0 : index
    %c0_8 = arith.constant 0 : index
    %10 = vector.load %arg3[%c0_6, %c0_7, %c0_8] : memref<2x4x256xf32, #tpu.memory_space<vmem>>, vector<2x4x256xf32>
    tpu.vector_store %arg3[%c0_6, %c0_7, %c0_8], %9 {strides = array<i32>} : memref<2x4x256xf32, #tpu.memory_space<vmem>>, vector<2x4x256xf32>,
    return
  }
  func.func @transform_0(%arg0: i32, %arg1: i32) -> (i32, i32, i32) {
    %c0_i32 = arith.constant 0 : i32
    %c0_i32_0 = arith.constant 0 : i32
    return %arg0, %c0_i32, %arg1 : i32, i32, i32
  }
  func.func @transform_1(%arg0: i32, %arg1: i32) -> (i32, i32, i32) {
    %c0_i32 = arith.constant 0 : i32
    %c0_i32_0 = arith.constant 0 : i32
    return %arg0, %c0_i32, %arg1 : i32, i32, i32
  }
}

</mosaic_0001>

<llo_original>
// kernel: tpu_custom_call.1
$region0: #{tpu_custom_call.1}
  #allocation0 [shape = 'u32[]', space=smem, size = 0x4, offset = 0x4, fixed_abs, tag = 'smem constant byte address 0x4 - core index']
  #allocation1 [shape = 'u32[144,128]{1,0:T(1,128)}', space=vmem, size = 0x12000, scoped, tag = 'internal scratch']
  %s0 = inlined_call_operand.hbm [shape: f32[2,4,256], index: 0, kind: input, shape index: {}]
  %s1 = inlined_call_operand.hbm [shape: f32[2,4,256], index: 1, kind: output, shape index: {}]
  %s2 = sld [smem:[#allocation0]]
  $region18: #{tpu_custom_call.1} parent=0
    _
  %s4 = ssub.s32 1, %s2
  %s5 = scalar_select 0, %s4, %s2
  $region1: #{tpu_custom_call.1} parent=0
    #allocation2 [shape = 'u8[8192]{0}', space=vmem, size = 0x2000, scoped, tag = 'input window, operand 0, single buffered']
    #allocation3 [shape = 's32[1]{0}', space=sflag, size = 0x4, scoped, tag = 'scoped memory for tpu_custom_call.1']
    #allocation4 [shape = 's32[1]{0}', space=sflag, size = 0x4, scoped, tag = 'scoped memory for tpu_custom_call.1']
    #allocation5 [shape = 'u8[8192]{0}', space=vmem, size = 0x2000, scoped, tag = 'output window, operand 0, single buffered']
    %6 = vsyncpa [#allocation3], 0
    %7 = vsyncpa [#allocation4], 0
    // Predicated region
    $region2: #{tpu_custom_call.1} parent=1 // pred_check
      _
    $region3: #{tpu_custom_call.1} parent=1 // pred_check_branch
      %9 = sbr.rel (0) target = $region5
    $region4: #{tpu_custom_call.1} parent=1 // pred_region
      %s11 = ssub.s32 256, 256
      %12 = vsyncadd [#allocation3], %s11
      %s13 = sshll.u32 [#allocation2], 4
      %s14 = int_to_ptr.vmem [resolvable:$true] %s13
      %19 = dma.hbm_to_vmem [thread:$0]  %s0, 256, %s14, [#allocation3], 128, 128, 8
    $region5: #{tpu_custom_call.1} parent=1 // pred_fallthru
      _
    // Predicated region
    $region6: #{tpu_custom_call.1} parent=1 // pred_check
      _
    $region7: #{tpu_custom_call.1} parent=1 // pred_check_branch
      %21 = sbr.rel (0) target = $region9
    $region8: #{tpu_custom_call.1} parent=1 // pred_region
      %22 = dma.done [#allocation3], 256
    $region9: #{tpu_custom_call.1} parent=1 // pred_fallthru
      _
    %v23 = vld [vmem:[#allocation2] sm:$0xff]
    %v24 = vld [vmem:[#allocation2 + $0x8] sm:$0xff]
    %v25 = vmul.f32 %v23, %v23
    %v26 = vmul.f32 %v24, %v24
    %v29 = vcombine.high %v25, %v25
    %v30 = vcombine.high %v26, %v26
    %vm33 = vcmask 1043456
    %v34 = vsel %vm33, %v25, 0.0
    %v35 = vrot.slane %v34, 4
    %v36 = vadd.f32 %v34, %v35
    %v37 = vrot.slane %v36, 2
    %v38 = vadd.f32 %v36, %v37
    %v39 = vrot.slane %v38, 1
    %v40 = vadd.f32 %v38, %v39
    %v41 = vsel %vm33, %v29, 0.0
    %v42 = vrot.slane %v41, 4
    %v43 = vadd.f32 %v41, %v42
    %v44 = vrot.slane %v43, 2
    %v45 = vadd.f32 %v43, %v44
    %v46 = vrot.slane %v45, 1
    %v47 = vadd.f32 %v45, %v46
    %v48 = vsel %vm33, %v26, 0.0
    %v49 = vrot.slane %v48, 4
    %v50 = vadd.f32 %v48, %v49
    %v51 = vrot.slane %v50, 2
    %v52 = vadd.f32 %v50, %v51
    %v53 = vrot.slane %v52, 1
    %v54 = vadd.f32 %v52, %v53
    %v55 = vsel %vm33, %v30, 0.0
    %v56 = vrot.slane %v55, 4
    %v57 = vadd.f32 %v55, %v56
    %v58 = vrot.slane %v57, 2
    %v59 = vadd.f32 %v57, %v58
    %v60 = vrot.slane %v59, 1
    %v61 = vadd.f32 %v59, %v60
    %v62 = vmax.f32 %v40, 1e-24
    %v63 = vmax.f32 %v47, 1e-24
    %v64 = vmax.f32 %v54, 1e-24
    %v65 = vmax.f32 %v61, 1e-24
    %v66 = vrsqrt.pop %v62
    %v67 = vrsqrt.pop %v63
    %v68 = vrsqrt.pop %v64
    %v69 = vrsqrt.pop %v65
    %v74 = vcombine.low %v66, %v67
    %v75 = vcombine.low %v68, %v69
    %v78 = vmul.f32 %v23, %v74
    %v79 = vmul.f32 %v24, %v75
    %80 = vst [vmem:[#allocation5] sm:$0xff] %v78
    %81 = vst [vmem:[#allocation5 + $0x8] sm:$0xff] %v79
    // Predicated region
    $region10: #{tpu_custom_call.1} parent=1 // pred_check
      _
    $region11: #{tpu_custom_call.1} parent=1 // pred_check_branch
      %83 = sbr.rel (0) target = $region13
    $region12: #{tpu_custom_call.1} parent=1 // pred_region
      %s85 = ssub.s32 256, 256
      %86 = vsyncadd [#allocation4], %s85
      %s87 = sshll.u32 [#allocation5], 4
      %s88 = int_to_ptr.vmem [resolvable:$true] %s87
      %93 = dma.vmem_to_hbm [thread:$0]  %s88, 256, %s1, [#allocation4], 128, 128, 8
    $region13: #{tpu_custom_call.1} parent=1 // pred_fallthru
      _
    // Predicated region
    $region14: #{tpu_custom_call.1} parent=1 // pred_check
      _
    $region15: #{tpu_custom_call.1} parent=1 // pred_check_branch
      %95 = sbr.rel (0) target = $region17
    $region16: #{tpu_custom_call.1} parent=1 // pred_region
      %96 = dma.done [#allocation4], 256
    $region17: #{tpu_custom_call.1} parent=1 // pred_fallthru
      _
    %97 = vsyncpa [#allocation3], 1
    %98 = vsyncpa [#allocation4], 1

</llo_original>
